<compile_context>
chip_gen: v6e
topology: v6e:2x2x1
jax: 0.10.0
libtpu: 0.0.40
codegen_flags: <defaults>
</compile_context>

<pallas_src>
import jax
import jax.numpy as jnp
from jax import lax
from jax.experimental import pallas as pl
from jax.experimental.pallas import tpu as pltpu


# ---------------------------------------------------------------------------
# helpers
# ---------------------------------------------------------------------------

def _round_up(x, m):
    return ((x + m - 1) // m) * m


def _sublane(dtype):
    # sub-32-bit dtypes pack along sublanes: tile is (8*packing, 128)
    itemsize = jnp.dtype(dtype).itemsize
    return 8 * max(1, 4 // itemsize)


def _vmem_caps():
    """(per-step tile budget bytes, #TensorCores hint) from this chip's VMEM."""
    try:
        cap = int(getattr(pltpu.get_tpu_info(), "vmem_capacity_bytes", 0))
    except Exception:
        cap = 0
    if cap <= 0:
        cap = 64 * 2**20                       # conservative (v7x-sized) fallback
    if cap >= 96 * 2**20:                      # v5e / v6e: 128 MiB VMEM, 1 TC
        return 64 * 2**20, 1
    return 24 * 2**20, 2                       # v7x-class: 64 MiB per TC, 2 TCs


def _choose_batch_tile(B, C, L, dtype, tile_budget, n_cores, max_batch_tile=None):
    itemsize = jnp.dtype(dtype).itemsize
    # padded bytes per batch row, as the DMA/VMEM actually sees them
    in_row = _round_up(C, _sublane(dtype)) * _round_up(L, 128) * itemsize
    out_row = _round_up(4 * C, 128) * itemsize
    # 2 inputs x 2 pipeline buffers + double-buffered output block.
    tb = max(1, tile_budget // (4 * in_row + 2 * out_row))
    if max_batch_tile is not None:
        tb = min(tb, int(max_batch_tile))
    if tb >= B:
        tb = B
        # Split across TensorCores only on 2-TC parts, and only if each half's
        # input DMA stays >= ~1 MiB (don't shrink DMAs below efficient size).
        if n_cores >= 2 and B >= 2:
            half = _round_up(-(-B // 2), 8)
            if half < B and half * in_row >= (1 << 20):
                tb = half
    else:
        # keep the output block's sublane dim a multiple of 8 (or == B)
        tb = min(B, max(8, (tb // 8) * 8))
    return int(tb)


# ---------------------------------------------------------------------------
# kernel
# ---------------------------------------------------------------------------

def _fused_sum_max(ref):
    """Single streaming pass over the last axis: (f32 sum, input-dtype max)."""
    _, _, L = ref.shape
    chunk = 128
    if L <= chunk or (L % chunk) != 0:
        x = ref[...]
        return jnp.sum(x, axis=-1, dtype=jnp.float32), jnp.max(x, axis=-1)

    n = L // chunk
    x0 = ref[:, :, pl.ds(0, chunk)]
    s0 = jnp.sum(x0, axis=-1, dtype=jnp.float32)
    m0 = jnp.max(x0, axis=-1)

    def body(j, carry):
        s, m = carry
        start = pl.multiple_of(j * chunk, chunk)
        x = ref[:, :, pl.ds(start, chunk)]
        s = s + jnp.sum(x, axis=-1, dtype=jnp.float32)
        m = jnp.maximum(m, jnp.max(x, axis=-1))
        return s, m

    return lax.fori_loop(1, n, body, (s0, m0), unroll=bool(n <= 8))


def _avg_max_fuse_kernel(sub_ref, obj_ref, out_ref):
    # sub_ref / obj_ref: (TB, C, L) VMEM tiles; out_ref: (TB, 4*C) lane-dense.
    _, C, L = sub_ref.shape
    inv_l = 1.0 / float(L)

    sub_sum, sub_max = _fused_sum_max(sub_ref)     # (TB, C) f32 / dtype
    obj_sum, obj_max = _fused_sum_max(obj_ref)

    od = out_ref.dtype
    # torch.cat order: [sub_avg, sub_max, obj_avg, obj_max]
    out_ref[:, 0 * C:1 * C] = (sub_sum * inv_l).astype(od)
    out_ref[:, 1 * C:2 * C] = sub_max.astype(od)
    out_ref[:, 2 * C:3 * C] = (obj_sum * inv_l).astype(od)
    out_ref[:, 3 * C:4 * C] = obj_max.astype(od)


# ---------------------------------------------------------------------------
# reference (also used as the small-problem bypass)
# ---------------------------------------------------------------------------

def _reference(subject_feats_in, object_feats_in):
    sub_avg = jnp.mean(subject_feats_in, axis=-1)
    sub_max = jnp.max(subject_feats_in, axis=-1)
    obj_avg = jnp.mean(object_feats_in, axis=-1)
    obj_max = jnp.max(object_feats_in, axis=-1)
    fused = jnp.concatenate([sub_avg, sub_max, obj_avg, obj_max], axis=-1)  # (B, 4C)
    if subject_feats_in.shape[0] == 1:
        return fused                         # torch .squeeze(0) drops the batch dim
    return fused[:, None, :]                 # (B, 1, 4C)


# ---------------------------------------------------------------------------
# wrapper
# ---------------------------------------------------------------------------

def entity_avg_max_feats(subject_feats_in, object_feats_in, bert_feat=None,
                         *, min_pallas_bytes=1 << 20, max_batch_tile=None):
    """Pallas implementation of entity_avg_max_feats.forward.

    subject_feats_in, object_feats_in: (B, C, L) arrays.
    bert_feat is accepted (as in the PyTorch signature) but unused.
    Returns (1, 4C) if B == 1 (torch .squeeze(0)), else (B, 1, 4C).
    """
    B, C, L = subject_feats_in.shape
    assert object_feats_in.shape == (B, C, L)
    dtype = subject_feats_in.dtype
    itemsize = jnp.dtype(dtype).itemsize

    # Small-problem bypass: below ~1 MiB of input, pallas_call dispatch and the
    # pipeline prologue dominate; XLA's fused mean/max/concat is faster.
    if 2 * B * C * L * itemsize < min_pallas_bytes:
        return _reference(subject_feats_in, object_feats_in)

    tile_budget, n_cores = _vmem_caps()
    tb = _choose_batch_tile(B, C, L, dtype, tile_budget, n_cores, max_batch_tile)
    num_blocks = pl.cdiv(B, tb)

    # vmem limit from *padded* tile bytes (2 inputs x 2 buffers + 2 out buffers)
    sl = _sublane(dtype)
    in_block_bytes = tb * _round_up(C, sl) * _round_up(L, 128) * itemsize
    out_block_bytes = _round_up(tb, sl) * _round_up(4 * C, 128) * itemsize
    required_vmem = 4 * in_block_bytes + 2 * out_block_bytes
    vmem_limit = int(min(max(required_vmem + 4 * 2**20, 32 * 2**20), 128 * 2**20))

    cost = pl.CostEstimate(
        flops=int(4 * B * C * L),
        transcendentals=0,
        bytes_accessed=int(2 * B * C * L * itemsize + 4 * B * C * itemsize),
    )

    out = pl.pallas_call(
        _avg_max_fuse_kernel,
        out_shape=jax.ShapeDtypeStruct((B, 4 * C), dtype),
        grid_spec=pltpu.PrefetchScalarGridSpec(
            num_scalar_prefetch=0,
            grid=(num_blocks,),
            in_specs=[
                pl.BlockSpec((tb, C, L), lambda i: (i, 0, 0)),
                pl.BlockSpec((tb, C, L), lambda i: (i, 0, 0)),
            ],
            out_specs=pl.BlockSpec((tb, 4 * C), lambda i: (i, 0)),
        ),
        compiler_params=pltpu.CompilerParams(
            dimension_semantics=("parallel",),
            vmem_limit_bytes=vmem_limit,
        ),
        cost_estimate=cost,
    )(subject_feats_in, object_feats_in)

    if B == 1:
        return out                 # (1, 4C): matches torch's .squeeze(0)
    return out[:, None, :]         # (B, 1, 4C)


# ---------------------------------------------------------------------------
# smoke tests
# ---------------------------------------------------------------------------

if __name__ == "__main__":
    key = jax.random.PRNGKey(0)
    k1, k2, k3, k4, k5 = jax.random.split(key, 5)

    # Case 1: B > 1, 4C == 128 (lane-dense output), whole batch in one block.
    B, C, L = 2, 32, 16
    sub = jax.random.normal(k1, (B, C, L), dtype=jnp.float32)
    obj = jax.random.normal(k2, (B, C, L), dtype=jnp.float32)
    bert = jax.random.normal(k3, (B, 768), dtype=jnp.float32)   # unused, as in torch
    out = jax.block_until_ready(
        entity_avg_max_feats(sub, obj, bert, min_pallas_bytes=0))
    ref = _reference(sub, obj)
    assert out.shape == ref.shape, (out.shape, ref.shape)
    assert jnp.allclose(out, ref, atol=1e-5, rtol=1e-5)

    # Case 2: B == 1 (torch .squeeze(0) -> (1, 4C)).
    sub1 = jax.random.normal(k4, (1, C, L), dtype=jnp.float32)
    obj1 = jax.random.normal(k5, (1, C, L), dtype=jnp.float32)
    out1 = jax.block_until_ready(
        entity_avg_max_feats(sub1, obj1, None, min_pallas_bytes=0))
    ref1 = _reference(sub1, obj1)
    assert out1.shape == ref1.shape
    assert jnp.allclose(out1, ref1, atol=1e-5, rtol=1e-5)

    # Case 3: B not a multiple of the batch tile -> exercises the no-pad
    # cdiv grid with a partial final block.
    B3 = 10
    sub3 = jax.random.normal(k1, (B3, C, L), dtype=jnp.float32)
    obj3 = jax.random.normal(k2, (B3, C, L), dtype=jnp.float32)
    out3 = jax.block_until_ready(
        entity_avg_max_feats(sub3, obj3, None, min_pallas_bytes=0, max_batch_tile=8))
    ref3 = _reference(sub3, obj3)
    assert out3.shape == ref3.shape
    assert jnp.allclose(out3, ref3, atol=1e-5, rtol=1e-5)

    # Case 4: L > 128 and a multiple of 128 -> exercises the chunked
    # fori_loop sum/max reduction path.
    L4 = 256
    sub4 = jax.random.normal(k4, (B, C, L4), dtype=jnp.float32)
    obj4 = jax.random.normal(k5, (B, C, L4), dtype=jnp.float32)
    out4 = jax.block_until_ready(
        entity_avg_max_feats(sub4, obj4, None, min_pallas_bytes=0))
    ref4 = _reference(sub4, obj4)
    assert out4.shape == ref4.shape
    assert jnp.allclose(out4, ref4, atol=1e-5, rtol=1e-5)

    print("KERNEL_OK")
</pallas_src>

<mosaic_0001>
module attributes {stable_mosaic.version = 11 : i64} {
  func.func @_avg_max_fuse_kernel(%arg0: i32, %arg1: memref<2x32x16xf32, #tpu.memory_space<vmem>>, %arg2: memref<2x32x16xf32, #tpu.memory_space<vmem>>, %arg3: memref<2x128xf32, #tpu.memory_space<vmem>>) attributes {dimension_semantics = [#tpu.dimension_semantics<parallel>], iteration_bounds = array<i64: 1>, scalar_prefetch = 0 : i64, scratch_operands = 0 : i64, tpu.core_type = #tpu.core_type<tc>, window_params = [{transform_indices = @transform_0, window_bounds = array<i64: 2, 32, 16>}, {transform_indices = @transform_1, window_bounds = array<i64: 2, 32, 16>}, {transform_indices = @transform_2, window_bounds = array<i64: 2, 128>}]} {
    %c0 = arith.constant 0 : index
    %c0_0 = arith.constant 0 : index
    %c0_1 = arith.constant 0 : index
    %0 = vector.load %arg1[%c0, %c0_0, %c0_1] : memref<2x32x16xf32, #tpu.memory_space<vmem>>, vector<2x32x16xf32>
    %cst = arith.constant dense<0.000000e+00> : vector<2x32xf32>
    %1 = vector.multi_reduction <add>, %0, %cst [2] : vector<2x32x16xf32> to vector<2x32xf32>
    %cst_2 = arith.constant dense<0xFF800000> : vector<2x32xf32>
    %2 = vector.multi_reduction <maximumf>, %0, %cst_2 [2] : vector<2x32x16xf32> to vector<2x32xf32>
    %c0_3 = arith.constant 0 : index
    %c0_4 = arith.constant 0 : index
    %c0_5 = arith.constant 0 : index
    %3 = vector.load %arg2[%c0_3, %c0_4, %c0_5] : memref<2x32x16xf32, #tpu.memory_space<vmem>>, vector<2x32x16xf32>
    %cst_6 = arith.constant dense<0.000000e+00> : vector<2x32xf32>
    %4 = vector.multi_reduction <add>, %3, %cst_6 [2] : vector<2x32x16xf32> to vector<2x32xf32>
    %cst_7 = arith.constant dense<0xFF800000> : vector<2x32xf32>
    %5 = vector.multi_reduction <maximumf>, %3, %cst_7 [2] : vector<2x32x16xf32> to vector<2x32xf32>
    %cst_8 = arith.constant 6.250000e-02 : f32
    %6 = vector.broadcast %cst_8 : f32 to vector<2x32xf32>
    %7 = arith.mulf %1, %6 : vector<2x32xf32>
    %c0_9 = arith.constant 0 : index
    %c0_10 = arith.constant 0 : index
    %8 = vector.load %arg3[%c0_9, %c0_10] : memref<2x128xf32, #tpu.memory_space<vmem>>, vector<2x32xf32>
    tpu.vector_store %arg3[%c0_9, %c0_10], %7 {strides = array<i32>} : memref<2x128xf32, #tpu.memory_space<vmem>>, vector<2x32xf32>,
    %c0_11 = arith.constant 0 : index
    %c32 = arith.constant 32 : index
    %9 = vector.load %arg3[%c0_11, %c32] : memref<2x128xf32, #tpu.memory_space<vmem>>, vector<2x32xf32>
    tpu.vector_store %arg3[%c0_11, %c32], %2 {strides = array<i32>} : memref<2x128xf32, #tpu.memory_space<vmem>>, vector<2x32xf32>,
    %cst_12 = arith.constant 6.250000e-02 : f32
    %10 = vector.broadcast %cst_12 : f32 to vector<2x32xf32>
    %11 = arith.mulf %4, %10 : vector<2x32xf32>
    %c0_13 = arith.constant 0 : index
    %c64 = arith.constant 64 : index
    %12 = vector.load %arg3[%c0_13, %c64] : memref<2x128xf32, #tpu.memory_space<vmem>>, vector<2x32xf32>
    tpu.vector_store %arg3[%c0_13, %c64], %11 {strides = array<i32>} : memref<2x128xf32, #tpu.memory_space<vmem>>, vector<2x32xf32>,
    %c0_14 = arith.constant 0 : index
    %c96 = arith.constant 96 : index
    %13 = vector.load %arg3[%c0_14, %c96] : memref<2x128xf32, #tpu.memory_space<vmem>>, vector<2x32xf32>
    tpu.vector_store %arg3[%c0_14, %c96], %5 {strides = array<i32>} : memref<2x128xf32, #tpu.memory_space<vmem>>, vector<2x32xf32>,
    return
  }
  func.func @transform_0(%arg0: i32) -> (i32, i32, i32) {
    %c0_i32 = arith.constant 0 : i32
    %c0_i32_0 = arith.constant 0 : i32
    %c0_i32_1 = arith.constant 0 : i32
    return %arg0, %c0_i32, %c0_i32_0 : i32, i32, i32
  }
  func.func @transform_1(%arg0: i32) -> (i32, i32, i32) {
    %c0_i32 = arith.constant 0 : i32
    %c0_i32_0 = arith.constant 0 : i32
    %c0_i32_1 = arith.constant 0 : i32
    return %arg0, %c0_i32, %c0_i32_0 : i32, i32, i32
  }
  func.func @transform_2(%arg0: i32) -> (i32, i32) {
    %c0_i32 = arith.constant 0 : i32
    %c0_i32_0 = arith.constant 0 : i32
    return %arg0, %c0_i32 : i32, i32
  }
}

</mosaic_0001>

<llo_original>
// kernel: tpu_custom_call.1
$region0: #{tpu_custom_call.1}
  #allocation0 [shape = 'u32[]', space=smem, size = 0x4, offset = 0x4, fixed_abs, tag = 'smem constant byte address 0x4 - core index']
  #allocation1 [shape = 'u32[144,128]{1,0:T(1,128)}', space=vmem, size = 0x12000, scoped, tag = 'internal scratch']
  %s0 = inlined_call_operand.vmem [shape: f32[2,32,16], index: 0, kind: input, shape index: {}]
  %s1 = inlined_call_operand.vmem [shape: f32[2,32,16], index: 1, kind: input, shape index: {}]
  %s2 = inlined_call_operand.hbm [shape: f32[2,128], index: 2, kind: output, shape index: {}]
  %s3 = sld [smem:[#allocation0]]
  $region18: #{tpu_custom_call.1} parent=0
    _
  %s5 = ssub.s32 1, %s3
  %s6 = scalar_select 0, %s5, %s3
  $region1: #{tpu_custom_call.1} parent=0
    #allocation2 [shape = 'u8[1024]{0}', space=vmem, size = 0x400, scoped, tag = 'output window, operand 0, single buffered']
    #allocation3 [shape = 's32[1]{0}', space=sflag, size = 0x4, scoped, tag = 'scoped memory for tpu_custom_call.1']
    %7 = vsyncpa [#allocation3], 0
    // Predicated region
    $region2: #{tpu_custom_call.1} parent=1 // pred_check
      _
    $region3: #{tpu_custom_call.1} parent=1 // pred_check_branch
      %9 = sbr.rel (0) target = $region5
    $region4: #{tpu_custom_call.1} parent=1 // pred_region
      _
    $region5: #{tpu_custom_call.1} parent=1 // pred_fallthru
      _
    // Predicated region
    $region6: #{tpu_custom_call.1} parent=1 // pred_check
      _
    $region7: #{tpu_custom_call.1} parent=1 // pred_check_branch
      %11 = sbr.rel (0) target = $region9
    $region8: #{tpu_custom_call.1} parent=1 // pred_region
      _
    $region9: #{tpu_custom_call.1} parent=1 // pred_fallthru
      _
    %v12 = vld [vmem:[%s0] sm:$0xff]
    %v13 = vld [vmem:[%s0 + $0x8] sm:$0xff]
    %v14 = vld [vmem:[%s0 + $0x10] sm:$0xff]
    %v15 = vld [vmem:[%s0 + $0x18] sm:$0xff]
    %v16 = vld [vmem:[%s0 + $0x20] sm:$0xff]
    %v17 = vld [vmem:[%s0 + $0x28] sm:$0xff]
    %v18 = vld [vmem:[%s0 + $0x30] sm:$0xff]
    %v19 = vld [vmem:[%s0 + $0x38] sm:$0xff]
    %vm20 = vcmask 130048
    %v21 = vsel %vm20, %v12, 0.0
    %22 = vadd.xlane.f32.xlu0 %v21
    %v23 = vpop.xlane.xlu0 %22
    %v24 = vsel %vm20, %v13, 0.0
    %25 = vadd.xlane.f32.xlu0 %v24
    %v26 = vpop.xlane.xlu0 %25
    %v27 = vsel %vm20, %v14, 0.0
    %28 = vadd.xlane.f32.xlu0 %v27
    %v29 = vpop.xlane.xlu0 %28
    %v30 = vsel %vm20, %v15, 0.0
    %31 = vadd.xlane.f32.xlu0 %v30
    %v32 = vpop.xlane.xlu0 %31
    %v33 = vsel %vm20, %v16, 0.0
    %34 = vadd.xlane.f32.xlu0 %v33
    %v35 = vpop.xlane.xlu0 %34
    %v36 = vsel %vm20, %v17, 0.0
    %37 = vadd.xlane.f32.xlu0 %v36
    %v38 = vpop.xlane.xlu0 %37
    %v39 = vsel %vm20, %v18, 0.0
    %40 = vadd.xlane.f32.xlu0 %v39
    %v41 = vpop.xlane.xlu0 %40
    %v42 = vsel %vm20, %v19, 0.0
    %43 = vadd.xlane.f32.xlu0 %v42
    %v44 = vpop.xlane.xlu0 %43
    %v45 = vsel %vm20, %v12, -inf
    %46 = vmax.xlane.f32.xlu0 %v45
    %v47 = vpop.xlane.xlu0 %46
    %v48 = vsel %vm20, %v13, -inf
    %49 = vmax.xlane.f32.xlu0 %v48
    %v50 = vpop.xlane.xlu0 %49
    %v51 = vsel %vm20, %v14, -inf
    %52 = vmax.xlane.f32.xlu0 %v51
    %v53 = vpop.xlane.xlu0 %52
    %v54 = vsel %vm20, %v15, -inf
    %55 = vmax.xlane.f32.xlu0 %v54
    %v56 = vpop.xlane.xlu0 %55
    %v57 = vsel %vm20, %v16, -inf
    %58 = vmax.xlane.f32.xlu0 %v57
    %v59 = vpop.xlane.xlu0 %58
    %v60 = vsel %vm20, %v17, -inf
    %61 = vmax.xlane.f32.xlu0 %v60
    %v62 = vpop.xlane.xlu0 %61
    %v63 = vsel %vm20, %v18, -inf
    %64 = vmax.xlane.f32.xlu0 %v63
    %v65 = vpop.xlane.xlu0 %64
    %v66 = vsel %vm20, %v19, -inf
    %67 = vmax.xlane.f32.xlu0 %v66
    %v68 = vpop.xlane.xlu0 %67
    %v69 = vld [vmem:[%s1] sm:$0xff]
    %v70 = vld [vmem:[%s1 + $0x8] sm:$0xff]
    %v71 = vld [vmem:[%s1 + $0x10] sm:$0xff]
    %v72 = vld [vmem:[%s1 + $0x18] sm:$0xff]
    %v73 = vld [vmem:[%s1 + $0x20] sm:$0xff]
    %v74 = vld [vmem:[%s1 + $0x28] sm:$0xff]
    %v75 = vld [vmem:[%s1 + $0x30] sm:$0xff]
    %v76 = vld [vmem:[%s1 + $0x38] sm:$0xff]
    %v77 = vsel %vm20, %v69, 0.0
    %78 = vadd.xlane.f32.xlu0 %v77
    %v79 = vpop.xlane.xlu0 %78
    %v80 = vsel %vm20, %v70, 0.0
    %81 = vadd.xlane.f32.xlu0 %v80
    %v82 = vpop.xlane.xlu0 %81
    %v83 = vsel %vm20, %v71, 0.0
    %84 = vadd.xlane.f32.xlu0 %v83
    %v85 = vpop.xlane.xlu0 %84
    %v86 = vsel %vm20, %v72, 0.0
    %87 = vadd.xlane.f32.xlu0 %v86
    %v88 = vpop.xlane.xlu0 %87
    %v89 = vsel %vm20, %v73, 0.0
    %90 = vadd.xlane.f32.xlu0 %v89
    %v91 = vpop.xlane.xlu0 %90
    %v92 = vsel %vm20, %v74, 0.0
    %93 = vadd.xlane.f32.xlu0 %v92
    %v94 = vpop.xlane.xlu0 %93
    %v95 = vsel %vm20, %v75, 0.0
    %96 = vadd.xlane.f32.xlu0 %v95
    %v97 = vpop.xlane.xlu0 %96
    %v98 = vsel %vm20, %v76, 0.0
    %99 = vadd.xlane.f32.xlu0 %v98
    %v100 = vpop.xlane.xlu0 %99
    %v101 = vsel %vm20, %v69, -inf
    %102 = vmax.xlane.f32.xlu0 %v101
    %v103 = vpop.xlane.xlu0 %102
    %v104 = vsel %vm20, %v70, -inf
    %105 = vmax.xlane.f32.xlu0 %v104
    %v106 = vpop.xlane.xlu0 %105
    %v107 = vsel %vm20, %v71, -inf
    %108 = vmax.xlane.f32.xlu0 %v107
    %v109 = vpop.xlane.xlu0 %108
    %v110 = vsel %vm20, %v72, -inf
    %111 = vmax.xlane.f32.xlu0 %v110
    %v112 = vpop.xlane.xlu0 %111
    %v113 = vsel %vm20, %v73, -inf
    %114 = vmax.xlane.f32.xlu0 %v113
    %v115 = vpop.xlane.xlu0 %114
    %v116 = vsel %vm20, %v74, -inf
    %117 = vmax.xlane.f32.xlu0 %v116
    %v118 = vpop.xlane.xlu0 %117
    %v119 = vsel %vm20, %v75, -inf
    %120 = vmax.xlane.f32.xlu0 %v119
    %v121 = vpop.xlane.xlu0 %120
    %v122 = vsel %vm20, %v76, -inf
    %123 = vmax.xlane.f32.xlu0 %v122
    %v124 = vpop.xlane.xlu0 %123
    %v125 = vmul.f32 %v23, 0.0625
    %v126 = vmul.f32 %v26, 0.0625
    %v127 = vmul.f32 %v29, 0.0625
    %v128 = vmul.f32 %v32, 0.0625
    %v129 = vmul.f32 %v35, 0.0625
    %v130 = vmul.f32 %v38, 0.0625
    %v131 = vmul.f32 %v41, 0.0625
    %v132 = vmul.f32 %v44, 0.0625
    %v141 = vlaneseq
    %v142 = vand.u32 %v141, 127
    %v143 = vlaneseq
    %v144 = vshrl.u32 %v143, 7
    %v145 = vsub.s32 %v142, %v144
    %v146 = vrot.slane %v125, %v145
    %v147 = vadd.s32 %v142, 4294967288
    %v148 = vlaneseq
    %v149 = vshrl.u32 %v148, 7
    %v150 = vsub.s32 %v147, %v149
    %v151 = vrot.slane %v126, %v150
    %vm152 = vcmask 130112
    %v153 = vsel %vm152, %v151, %v146
    %v154 = vadd.s32 %v142, 4294967280
    %v155 = vlaneseq
    %v156 = vshrl.u32 %v155, 7
    %v157 = vsub.s32 %v154, %v156
    %v158 = vrot.slane %v127, %v157
    %vm159 = vcmask 195712
    %v160 = vsel %vm159, %v158, %v153
    %v161 = vadd.s32 %v142, 4294967272
    %v162 = vlaneseq
    %v163 = vshrl.u32 %v162, 7
    %v164 = vsub.s32 %v161, %v163
    %v165 = vrot.slane %v128, %v164
    %vm166 = vcmask 261312
    %v167 = vsel %vm166, %v165, %v160
    %v168 = vlaneseq
    %v169 = vshrl.u32 %v168, 7
    %v170 = vsub.s32 %v142, %v169
    %v171 = vrot.slane %v129, %v170
    %v172 = vlaneseq
    %v173 = vshrl.u32 %v172, 7
    %v174 = vsub.s32 %v147, %v173
    %v175 = vrot.slane %v130, %v174
    %v176 = vsel %vm152, %v175, %v171
    %v177 = vlaneseq
    %v178 = vshrl.u32 %v177, 7
    %v179 = vsub.s32 %v154, %v178
    %v180 = vrot.slane %v131, %v179
    %v181 = vsel %vm159, %v180, %v176
    %v182 = vlaneseq
    %v183 = vshrl.u32 %v182, 7
    %v184 = vsub.s32 %v161, %v183
    %v185 = vrot.slane %v132, %v184
    %v186 = vsel %vm166, %v185, %v181
    %vm187 = vcmask 1041409
    %v188 = vsel %vm187, %v186, %v167
    %vm190 = vcmask 254976
    %191 = vst.msk [vmem:[#allocation2] sm:$0x3] %vm190, %v188
    %v200 = vadd.s32 %v142, 4294967264
    %v201 = vlaneseq
    %v202 = vshrl.u32 %v201, 7
    %v203 = vsub.s32 %v200, %v202
    %v204 = vrot.slane %v47, %v203
    %v205 = vadd.s32 %v142, 4294967256
    %v206 = vlaneseq
    %v207 = vshrl.u32 %v206, 7
    %v208 = vsub.s32 %v205, %v207
    %v209 = vrot.slane %v50, %v208
    %vm210 = vcmask 392512
    %v211 = vsel %vm210, %v209, %v204
    %v212 = vadd.s32 %v142, 4294967248
    %v213 = vlaneseq
    %v214 = vshrl.u32 %v213, 7
    %v215 = vsub.s32 %v212, %v214
    %v216 = vrot.slane %v53, %v215
    %vm217 = vcmask 458112
    %v218 = vsel %vm217, %v216, %v211
    %v219 = vadd.s32 %v142, 4294967240
    %v220 = vlaneseq
    %v221 = vshrl.u32 %v220, 7
    %v222 = vsub.s32 %v219, %v221
    %v223 = vrot.slane %v56, %v222
    %vm224 = vcmask 523712
    %v225 = vsel %vm224, %v223, %v218
    %v226 = vlaneseq
    %v227 = vshrl.u32 %v226, 7
    %v228 = vsub.s32 %v200, %v227
    %v229 = vrot.slane %v59, %v228
    %v230 = vlaneseq
    %v231 = vshrl.u32 %v230, 7
    %v232 = vsub.s32 %v205, %v231
    %v233 = vrot.slane %v62, %v232
    %v234 = vsel %vm210, %v233, %v229
    %v235 = vlaneseq
    %v236 = vshrl.u32 %v235, 7
    %v237 = vsub.s32 %v212, %v236
    %v238 = vrot.slane %v65, %v237
    %v239 = vsel %vm217, %v238, %v234
    %v240 = vlaneseq
    %v241 = vshrl.u32 %v240, 7
    %v242 = vsub.s32 %v219, %v241
    %v243 = vrot.slane %v68, %v242
    %v244 = vsel %vm224, %v243, %v239
    %v245 = vsel %vm187, %v244, %v225
    %vm247 = vcmask 517376
    %248 = vst.msk [vmem:[#allocation2] sm:$0x3] %vm247, %v245
    %v249 = vmul.f32 %v79, 0.0625
    %v250 = vmul.f32 %v82, 0.0625
    %v251 = vmul.f32 %v85, 0.0625
    %v252 = vmul.f32 %v88, 0.0625
    %v253 = vmul.f32 %v91, 0.0625
    %v254 = vmul.f32 %v94, 0.0625
    %v255 = vmul.f32 %v97, 0.0625
    %v256 = vmul.f32 %v100, 0.0625
    %v265 = vadd.s32 %v142, 4294967232
    %v266 = vlaneseq
    %v267 = vshrl.u32 %v266, 7
    %v268 = vsub.s32 %v265, %v267
    %v269 = vrot.slane %v249, %v268
    %v270 = vadd.s32 %v142, 4294967224
    %v271 = vlaneseq
    %v272 = vshrl.u32 %v271, 7
    %v273 = vsub.s32 %v270, %v272
    %v274 = vrot.slane %v250, %v273
    %vm275 = vcmask 654912
    %v276 = vsel %vm275, %v274, %v269
    %v277 = vadd.s32 %v142, 4294967216
    %v278 = vlaneseq
    %v279 = vshrl.u32 %v278, 7
    %v280 = vsub.s32 %v277, %v279
    %v281 = vrot.slane %v251, %v280
    %vm282 = vcmask 720512
    %v283 = vsel %vm282, %v281, %v276
    %v284 = vadd.s32 %v142, 4294967208
    %v285 = vlaneseq
    %v286 = vshrl.u32 %v285, 7
    %v287 = vsub.s32 %v284, %v286
    %v288 = vrot.slane %v252, %v287
    %vm289 = vcmask 786112
    %v290 = vsel %vm289, %v288, %v283
    %v291 = vlaneseq
    %v292 = vshrl.u32 %v291, 7
    %v293 = vsub.s32 %v265, %v292
    %v294 = vrot.slane %v253, %v293
    %v295 = vlaneseq
    %v296 = vshrl.u32 %v295, 7
    %v297 = vsub.s32 %v270, %v296
    %v298 = vrot.slane %v254, %v297
    %v299 = vsel %vm275, %v298, %v294
    %v300 = vlaneseq
    %v301 = vshrl.u32 %v300, 7
    %v302 = vsub.s32 %v277, %v301
    %v303 = vrot.slane %v255, %v302
    %v304 = vsel %vm282, %v303, %v299
    %v305 = vlaneseq
    %v306 = vshrl.u32 %v305, 7
    %v307 = vsub.s32 %v284, %v306
    %v308 = vrot.slane %v256, %v307
    %v309 = vsel %vm289, %v308, %v304
    %v310 = vsel %vm187, %v309, %v290
    %vm312 = vcmask 779776
    %313 = vst.msk [vmem:[#allocation2] sm:$0x3] %vm312, %v310
    %v322 = vadd.s32 %v142, 4294967200
    %v323 = vlaneseq
    %v324 = vshrl.u32 %v323, 7
    %v325 = vsub.s32 %v322, %v324
    %v326 = vrot.slane %v103, %v325
    %v327 = vadd.s32 %v142, 4294967192
    %v328 = vlaneseq
    %v329 = vshrl.u32 %v328, 7
    %v330 = vsub.s32 %v327, %v329
    %v331 = vrot.slane %v106, %v330
    %vm332 = vcmask 917312
    %v333 = vsel %vm332, %v331, %v326
    %v334 = vadd.s32 %v142, 4294967184
    %v335 = vlaneseq
    %v336 = vshrl.u32 %v335, 7
    %v337 = vsub.s32 %v334, %v336
    %v338 = vrot.slane %v109, %v337
    %vm339 = vcmask 982912
    %v340 = vsel %vm339, %v338, %v333
    %v341 = vadd.s32 %v142, 4294967176
    %v342 = vlaneseq
    %v343 = vshrl.u32 %v342, 7
    %v344 = vsub.s32 %v341, %v343
    %v345 = vrot.slane %v112, %v344
    %vm346 = vcmask 1048512
    %v347 = vsel %vm346, %v345, %v340
    %v348 = vlaneseq
    %v349 = vshrl.u32 %v348, 7
    %v350 = vsub.s32 %v322, %v349
    %v351 = vrot.slane %v115, %v350
    %v352 = vlaneseq
    %v353 = vshrl.u32 %v352, 7
    %v354 = vsub.s32 %v327, %v353
    %v355 = vrot.slane %v118, %v354
    %v356 = vsel %vm332, %v355, %v351
    %v357 = vlaneseq
    %v358 = vshrl.u32 %v357, 7
    %v359 = vsub.s32 %v334, %v358
    %v360 = vrot.slane %v121, %v359
    %v361 = vsel %vm339, %v360, %v356
    %v362 = vlaneseq
    %v363 = vshrl.u32 %v362, 7
    %v364 = vsub.s32 %v341, %v363
    %v365 = vrot.slane %v124, %v364
    %v366 = vsel %vm346, %v365, %v361
    %v367 = vsel %vm187, %v366, %v347
    %vm369 = vcmask 1042176
    %370 = vst.msk [vmem:[#allocation2] sm:$0x3] %vm369, %v367
    // Predicated region
    $region10: #{tpu_custom_call.1} parent=1 // pred_check
      _
    $region11: #{tpu_custom_call.1} parent=1 // pred_check_branch
      %372 = sbr.rel (0) target = $region13
    $region12: #{tpu_custom_call.1} parent=1 // pred_region
      %s374 = ssub.s32 32, 32
      %375 = vsyncadd [#allocation3], %s374
      %s377 = sshll.u32 [#allocation2], 4
      %s378 = int_to_ptr.vmem [resolvable:$true] %s377
      %380 = dma.vmem_to_hbm [thread:$0]  %s378, 32, %s2, [#allocation3]
    $region13: #{tpu_custom_call.1} parent=1 // pred_fallthru
      _
    // Predicated region
    $region14: #{tpu_custom_call.1} parent=1 // pred_check
      _
    $region15: #{tpu_custom_call.1} parent=1 // pred_check_branch
      %382 = sbr.rel (0) target = $region17
    $region16: #{tpu_custom_call.1} parent=1 // pred_region
      %383 = dma.done [#allocation3], 32
    $region17: #{tpu_custom_call.1} parent=1 // pred_fallthru
      _
    %384 = vsyncpa [#allocation3], 1

</llo_original>
